<compile_context>
chip_gen: v6e
topology: v6e:2x2x1
jax: 0.10.0
libtpu: 0.0.40
codegen_flags: <defaults>
</compile_context>

<pallas_src>
import jax
import jax.numpy as jnp
from jax.experimental import pallas as pl
from jax.experimental.pallas import tpu as pltpu

LANE = 128
SUBLANE = 8


def _round_up(n, m):
    return ((n + m - 1) // m) * m


def _make_dense_block_kernel(n_layers, f0p, gp, use_bn, batch_real, eps):
    """Kernel factory. All shapes/widths are static Python ints (lane-padded)."""

    def kernel(*refs):
        # refs = (x_ref, w_ref_0..w_ref_{L-1}, packed_small..., out_ref)
        x_ref = refs[0]
        w_refs = refs[1:1 + n_layers]
        idx = 1 + n_layers
        if use_bn:
            gamma_ref, beta_ref = refs[idx], refs[idx + 1]
            idx += 2
        else:
            bias_ref = refs[idx]
            idx += 1
        out_ref = refs[idx]

        xin = x_ref[...]                           # [TB, F0p], compute dtype
        if use_bn:
            gammas = gamma_ref[...]                # [L, Gp], f32
            betas = beta_ref[...]                  # [L, Gp], f32
        else:
            biases = bias_ref[...]                 # [L, Gp], f32

        inv_b = 1.0 / float(batch_real)            # real (un-padded) batch size

        for i in range(n_layers):
            w_ref = w_refs[i]                      # [F0p + i*Gp, Gp]
            # Linear on the MXU, split into the x-prefix part and the
            # previously-produced-features part.  Both operands are
            # 128-aligned views; accumulation in f32.
            acc = jnp.dot(xin, w_ref[pl.ds(0, f0p), :],
                          preferred_element_type=jnp.float32)
            if i > 0:
                acc = acc + jnp.dot(out_ref[:, pl.ds(0, i * gp)],
                                    w_ref[pl.ds(f0p, i * gp), :],
                                    preferred_element_type=jnp.float32)

            if use_bn:
                # Training-mode BatchNorm1d (biased variance), one-pass stats.
                # The Linear bias is mathematically cancelled by the mean
                # subtraction, so it is never added.
                mean = jnp.sum(acc, axis=0, keepdims=True) * inv_b
                ex2 = jnp.sum(acc * acc, axis=0, keepdims=True) * inv_b
                var = ex2 - mean * mean
                y = (acc - mean) * jax.lax.rsqrt(var + eps)
                y = y * gammas[i:i + 1, :] + betas[i:i + 1, :]
            else:
                y = acc + biases[i:i + 1, :]

            y = jnp.maximum(y, 0.0)                # activation = ReLU

            # Lane-dense, 128-aligned store of this layer's new features.
            out_ref[:, pl.ds(i * gp, gp)] = y.astype(out_ref.dtype)

    return kernel


def _pack_params(layer_params, *, in_features, growth_rate, n_layers, use_bn,
                 compute_dtype):
    """Host-side repacking: lane-pad weights, pack the tiny per-layer vectors."""
    F0, G, L = in_features, growth_rate, n_layers
    F0p = _round_up(F0, LANE)
    Gp = _round_up(G, LANE)

    w_padded = []
    for i, p in enumerate(layer_params):
        w = p[0]                                   # [F0 + i*G, G]
        wp = jnp.zeros((F0p + i * Gp, Gp), jnp.float32)
        wp = wp.at[:F0, :G].set(w[:F0, :])
        for j in range(i):
            wp = wp.at[F0p + j * Gp:F0p + j * Gp + G, :G].set(
                w[F0 + j * G:F0 + (j + 1) * G, :])
        w_padded.append(wp.astype(compute_dtype))

    if use_bn:
        gamma = jnp.zeros((L, Gp), jnp.float32)
        beta = jnp.zeros((L, Gp), jnp.float32)
        for i, p in enumerate(layer_params):
            gamma = gamma.at[i, :G].set(p[2].reshape(-1))
            beta = beta.at[i, :G].set(p[3].reshape(-1))
        small = (gamma, beta)
    else:
        bias = jnp.zeros((L, Gp), jnp.float32)
        for i, p in enumerate(layer_params):
            bias = bias.at[i, :G].set(p[1].reshape(-1))
        small = (bias,)
    return w_padded, small, F0p, Gp


def _pick_batch_tile(b, f0p, gp, n_layers, dsize, max_bytes=20 * 1024 * 1024):
    """Pick a batch tile so the per-step working set stays VMEM-friendly on
    every generation (incl. v7x's 64 MiB / 32 MiB scoped default)."""
    w_bytes = sum((f0p + i * gp) * gp for i in range(n_layers)) * dsize * 2
    budget = max(max_bytes - w_bytes, 1 << 20)
    per_row = (f0p + n_layers * gp) * dsize * 2    # x + out blocks, double-buffered
    tb = max(SUBLANE, min(512, (budget // per_row) // SUBLANE * SUBLANE))
    return int(min(tb, _round_up(b, SUBLANE)))


def dense_block_forward(x, layer_params, *, in_features, growth_rate, n_layers,
                        use_bn, compute_dtype=jnp.float32, batch_tile=None,
                        eps=1e-5):
    """Pallas forward pass matching the PyTorch DenseBlock (ReLU activation,
    training-mode BatchNorm1d).  Returns the concat of new_features [B, L*G]."""
    B, F0 = x.shape
    assert F0 == in_features
    G, L = growth_rate, n_layers

    w_padded, small, F0p, Gp = _pack_params(
        layer_params, in_features=F0, growth_rate=G, n_layers=L,
        use_bn=use_bn, compute_dtype=compute_dtype)
    dsize = jnp.dtype(compute_dtype).itemsize

    if use_bn:
        # Training-mode BN needs statistics over the whole batch -> one tile.
        # TODO(synk): a cross-tile BN reduction pass would be needed to batch-
        # tile this path for batches too large for a single VMEM tile.
        TB = B
        Bp = B
        semantics = ("arbitrary",)
    else:
        TB = batch_tile if batch_tile is not None else _pick_batch_tile(
            B, F0p, Gp, L, dsize)
        TB = int(min(TB, _round_up(B, SUBLANE)))
        Bp = _round_up(B, TB)
        semantics = ("parallel",)

    # Pad & cast the block input (lane-padded columns, zero rows if needed).
    xp = jnp.zeros((Bp, F0p), compute_dtype).at[:B, :F0].set(
        x.astype(compute_dtype))

    kernel = _make_dense_block_kernel(L, F0p, Gp, use_bn, B, eps)

    in_specs = [pl.BlockSpec((TB, F0p), lambda b: (b, 0))]
    for i in range(L):
        in_specs.append(pl.BlockSpec((F0p + i * Gp, Gp), lambda b: (0, 0)))
    for _ in small:
        in_specs.append(pl.BlockSpec((L, Gp), lambda b: (0, 0)))
    out_spec = pl.BlockSpec((TB, L * Gp), lambda b: (b, 0))

    out_padded = pl.pallas_call(
        kernel,
        out_shape=jax.ShapeDtypeStruct((Bp, L * Gp), compute_dtype),
        grid_spec=pltpu.PrefetchScalarGridSpec(
            num_scalar_prefetch=0,
            grid=(Bp // TB,),
            in_specs=in_specs,
            out_specs=out_spec),
        compiler_params=pltpu.CompilerParams(dimension_semantics=semantics),
    )(xp, *w_padded, *small)

    # Wrapper-side layout plumbing: drop batch padding and per-layer lane pad.
    out = out_padded[:B]
    if Gp != G:
        out = out.reshape(B, L, Gp)[:, :, :G].reshape(B, L * G)
    return out.astype(x.dtype)


def dense_block_reference(x, layer_params, *, use_bn, eps=1e-5):
    """Pure-JAX reference identical to the PyTorch forward (training-mode BN, ReLU)."""
    new_features = []
    for p in layer_params:
        w, b = p[0], p[1]
        out = x @ w + b
        if use_bn:
            gamma, beta = p[2], p[3]
            mean = jnp.mean(out, axis=0, keepdims=True)
            var = jnp.mean((out - mean) ** 2, axis=0, keepdims=True)
            out = (out - mean) / jnp.sqrt(var + eps)
            out = out * gamma + beta
        out = jnp.maximum(out, 0.0)
        x = jnp.concatenate([x, out], -1)
        new_features.append(out)
    return jnp.concatenate(new_features, -1)


def init_params(key, in_features, growth_rate, n_layers, use_bn):
    """Deterministic synthetic parameters (shapes match the PyTorch module,
    with Linear weights stored transposed as [in, out])."""
    params = []
    for i in range(n_layers):
        f_in = in_features + i * growth_rate
        key, kw, kb = jax.random.split(key, 3)
        bound = 1.0 / jnp.sqrt(jnp.float32(f_in))
        w = jax.random.uniform(kw, (f_in, growth_rate), jnp.float32, -bound, bound)
        b = jax.random.uniform(kb, (1, growth_rate), jnp.float32, -bound, bound)
        if use_bn:
            gamma = jnp.ones((1, growth_rate), jnp.float32)
            beta = jnp.zeros((1, growth_rate), jnp.float32)
            params.append((w, b, gamma, beta))
        else:
            params.append((w, b))
    return params


if __name__ == "__main__":
    IN_FEATURES = 16
    GROWTH_RATE = 8
    N_LAYERS = 4

    key = jax.random.PRNGKey(0)

    # --- A: BatchNorm path (training-mode batch stats), f32 -----------------
    kx, kp, key = jax.random.split(key, 3)
    B = 8
    x = jax.random.normal(kx, (B, IN_FEATURES), jnp.float32)
    params = init_params(kp, IN_FEATURES, GROWTH_RATE, N_LAYERS, use_bn=True)
    out = jax.block_until_ready(dense_block_forward(
        x, params, in_features=IN_FEATURES, growth_rate=GROWTH_RATE,
        n_layers=N_LAYERS, use_bn=True))
    ref = dense_block_reference(x, params, use_bn=True)
    assert out.shape == (B, N_LAYERS * GROWTH_RATE), out.shape
    assert jnp.allclose(out, ref, rtol=1e-3, atol=1e-3), \
        float(jnp.max(jnp.abs(out - ref)))

    # --- B: no-BN path, batch-tiled grid ("parallel"), f32 ------------------
    kx, kp, key = jax.random.split(key, 3)
    B = 20                      # deliberately not a multiple of the batch tile
    x = jax.random.normal(kx, (B, IN_FEATURES), jnp.float32)
    params = init_params(kp, IN_FEATURES, GROWTH_RATE, N_LAYERS, use_bn=False)
    out = jax.block_until_ready(dense_block_forward(
        x, params, in_features=IN_FEATURES, growth_rate=GROWTH_RATE,
        n_layers=N_LAYERS, use_bn=False, batch_tile=8))
    ref = dense_block_reference(x, params, use_bn=False)
    assert out.shape == (B, N_LAYERS * GROWTH_RATE), out.shape
    assert jnp.allclose(out, ref, rtol=1e-3, atol=1e-3), \
        float(jnp.max(jnp.abs(out - ref)))

    # --- C: BN path with bf16 MXU inputs (f32 accumulation + f32 BN stats) --
    kx, kp, key = jax.random.split(key, 3)
    B = 8
    x = jax.random.normal(kx, (B, IN_FEATURES), jnp.float32)
    params = init_params(kp, IN_FEATURES, GROWTH_RATE, N_LAYERS, use_bn=True)
    out = jax.block_until_ready(dense_block_forward(
        x, params, in_features=IN_FEATURES, growth_rate=GROWTH_RATE,
        n_layers=N_LAYERS, use_bn=True, compute_dtype=jnp.bfloat16))
    ref = dense_block_reference(x, params, use_bn=True)
    assert out.shape == (B, N_LAYERS * GROWTH_RATE), out.shape
    assert jnp.allclose(out, ref, rtol=5e-2, atol=5e-2), \
        float(jnp.max(jnp.abs(out - ref)))

    print("KERNEL_OK")
</pallas_src>

<mosaic_0001>
module attributes {stable_mosaic.version = 11 : i64} {
  func.func @kernel(%arg0: i32, %arg1: memref<8x128xf32, #tpu.memory_space<vmem>>, %arg2: memref<128x128xf32, #tpu.memory_space<vmem>>, %arg3: memref<256x128xf32, #tpu.memory_space<vmem>>, %arg4: memref<384x128xf32, #tpu.memory_space<vmem>>, %arg5: memref<512x128xf32, #tpu.memory_space<vmem>>, %arg6: memref<4x128xf32, #tpu.memory_space<vmem>>, %arg7: memref<4x128xf32, #tpu.memory_space<vmem>>, %arg8: memref<8x512xf32, #tpu.memory_space<vmem>>) attributes {dimension_semantics = [#tpu.dimension_semantics<arbitrary>], iteration_bounds = array<i64: 1>, scalar_prefetch = 0 : i64, scratch_operands = 0 : i64, tpu.core_type = #tpu.core_type<tc>, window_params = [{transform_indices = @transform_0, window_bounds = array<i64: 8, 128>}, {pipeline_mode = #tpu.pipeline_mode<synchronous>, transform_indices = @transform_1, window_bounds = array<i64: 128, 128>}, {pipeline_mode = #tpu.pipeline_mode<synchronous>, transform_indices = @transform_2, window_bounds = array<i64: 256, 128>}, {pipeline_mode = #tpu.pipeline_mode<synchronous>, transform_indices = @transform_3, window_bounds = array<i64: 384, 128>}, {pipeline_mode = #tpu.pipeline_mode<synchronous>, transform_indices = @transform_4, window_bounds = array<i64: 512, 128>}, {pipeline_mode = #tpu.pipeline_mode<synchronous>, transform_indices = @transform_5, window_bounds = array<i64: 4, 128>}, {pipeline_mode = #tpu.pipeline_mode<synchronous>, transform_indices = @transform_6, window_bounds = array<i64: 4, 128>}, {transform_indices = @transform_7, window_bounds = array<i64: 8, 512>}]} {
    %c0 = arith.constant 0 : index
    %c0_0 = arith.constant 0 : index
    %0 = vector.load %arg1[%c0, %c0_0] : memref<8x128xf32, #tpu.memory_space<vmem>>, vector<8x128xf32>
    %c0_1 = arith.constant 0 : index
    %c0_2 = arith.constant 0 : index
    %1 = vector.load %arg6[%c0_1, %c0_2] : memref<4x128xf32, #tpu.memory_space<vmem>>, vector<4x128xf32>
    %c0_3 = arith.constant 0 : index
    %c0_4 = arith.constant 0 : index
    %2 = vector.load %arg7[%c0_3, %c0_4] : memref<4x128xf32, #tpu.memory_space<vmem>>, vector<4x128xf32>
    %c0_5 = arith.constant 0 : index
    %c0_6 = arith.constant 0 : index
    %3 = vector.load %arg2[%c0_5, %c0_6] : memref<128x128xf32, #tpu.memory_space<vmem>>, vector<128x128xf32>
    %cst = arith.constant dense<0.000000e+00> : vector<8x128xf32>
    %4 = tpu.matmul %0, %3, %cst {dimension_numbers = #tpu.dot_dimension_numbers<[1], [0], [0], [1], [0, 0, 1, 1], [], []>} : vector<8x128xf32>, vector<128x128xf32>, vector<8x128xf32> -> vector<8x128xf32>
    %cst_7 = arith.constant dense<0.000000e+00> : vector<128xf32>
    %5 = vector.multi_reduction <add>, %4, %cst_7 [0] : vector<8x128xf32> to vector<128xf32>
    %6 = vector.shape_cast %5 : vector<128xf32> to vector<1x128xf32>
    %cst_8 = arith.constant 1.250000e-01 : f32
    %7 = vector.broadcast %cst_8 : f32 to vector<1x128xf32>
    %8 = arith.mulf %6, %7 : vector<1x128xf32>
    %9 = arith.mulf %4, %4 : vector<8x128xf32>
    %cst_9 = arith.constant dense<0.000000e+00> : vector<128xf32>
    %10 = vector.multi_reduction <add>, %9, %cst_9 [0] : vector<8x128xf32> to vector<128xf32>
    %11 = vector.shape_cast %10 : vector<128xf32> to vector<1x128xf32>
    %cst_10 = arith.constant 1.250000e-01 : f32
    %12 = vector.broadcast %cst_10 : f32 to vector<1x128xf32>
    %13 = arith.mulf %11, %12 : vector<1x128xf32>
    %14 = arith.mulf %8, %8 : vector<1x128xf32>
    %15 = arith.subf %13, %14 : vector<1x128xf32>
    %16 = vector.broadcast %8 : vector<1x128xf32> to vector<8x128xf32>
    %17 = arith.subf %4, %16 : vector<8x128xf32>
    %cst_11 = arith.constant 9.99999974E-6 : f32
    %18 = vector.broadcast %cst_11 : f32 to vector<1x128xf32>
    %19 = arith.addf %15, %18 : vector<1x128xf32>
    %20 = math.rsqrt %19 : vector<1x128xf32>
    %21 = vector.broadcast %20 : vector<1x128xf32> to vector<8x128xf32>
    %22 = arith.mulf %17, %21 : vector<8x128xf32>
    %23 = vector.extract_strided_slice %1 {offsets = [0, 0], sizes = [1, 128], strides = [1, 1]} : vector<4x128xf32> to vector<1x128xf32>
    %24 = vector.broadcast %23 : vector<1x128xf32> to vector<8x128xf32>
    %25 = arith.mulf %22, %24 : vector<8x128xf32>
    %26 = vector.extract_strided_slice %2 {offsets = [0, 0], sizes = [1, 128], strides = [1, 1]} : vector<4x128xf32> to vector<1x128xf32>
    %27 = vector.broadcast %26 : vector<1x128xf32> to vector<8x128xf32>
    %28 = arith.addf %25, %27 : vector<8x128xf32>
    %cst_12 = arith.constant 0.000000e+00 : f32
    %29 = vector.broadcast %cst_12 : f32 to vector<8x128xf32>
    %30 = arith.maximumf %28, %29 : vector<8x128xf32>
    %c0_13 = arith.constant 0 : index
    %c0_14 = arith.constant 0 : index
    %31 = vector.load %arg8[%c0_13, %c0_14] : memref<8x512xf32, #tpu.memory_space<vmem>>, vector<8x128xf32>
    tpu.vector_store %arg8[%c0_13, %c0_14], %30 {strides = array<i32>} : memref<8x512xf32, #tpu.memory_space<vmem>>, vector<8x128xf32>,
    %c0_15 = arith.constant 0 : index
    %c0_16 = arith.constant 0 : index
    %32 = vector.load %arg3[%c0_15, %c0_16] : memref<256x128xf32, #tpu.memory_space<vmem>>, vector<128x128xf32>
    %cst_17 = arith.constant dense<0.000000e+00> : vector<8x128xf32>
    %33 = tpu.matmul %0, %32, %cst_17 {dimension_numbers = #tpu.dot_dimension_numbers<[1], [0], [0], [1], [0, 0, 1, 1], [], []>} : vector<8x128xf32>, vector<128x128xf32>, vector<8x128xf32> -> vector<8x128xf32>
    %c0_18 = arith.constant 0 : index
    %c0_19 = arith.constant 0 : index
    %34 = vector.load %arg8[%c0_18, %c0_19] : memref<8x512xf32, #tpu.memory_space<vmem>>, vector<8x128xf32>
    %c128 = arith.constant 128 : index
    %c0_20 = arith.constant 0 : index
    %35 = vector.load %arg3[%c128, %c0_20] : memref<256x128xf32, #tpu.memory_space<vmem>>, vector<128x128xf32>
    %cst_21 = arith.constant dense<0.000000e+00> : vector<8x128xf32>
    %36 = tpu.matmul %34, %35, %cst_21 {dimension_numbers = #tpu.dot_dimension_numbers<[1], [0], [0], [1], [0, 0, 1, 1], [], []>} : vector<8x128xf32>, vector<128x128xf32>, vector<8x128xf32> -> vector<8x128xf32>
    %37 = arith.addf %33, %36 : vector<8x128xf32>
    %cst_22 = arith.constant dense<0.000000e+00> : vector<128xf32>
    %38 = vector.multi_reduction <add>, %37, %cst_22 [0] : vector<8x128xf32> to vector<128xf32>
    %39 = vector.shape_cast %38 : vector<128xf32> to vector<1x128xf32>
    %cst_23 = arith.constant 1.250000e-01 : f32
    %40 = vector.broadcast %cst_23 : f32 to vector<1x128xf32>
    %41 = arith.mulf %39, %40 : vector<1x128xf32>
    %42 = arith.mulf %37, %37 : vector<8x128xf32>
    %cst_24 = arith.constant dense<0.000000e+00> : vector<128xf32>
    %43 = vector.multi_reduction <add>, %42, %cst_24 [0] : vector<8x128xf32> to vector<128xf32>
    %44 = vector.shape_cast %43 : vector<128xf32> to vector<1x128xf32>
    %cst_25 = arith.constant 1.250000e-01 : f32
    %45 = vector.broadcast %cst_25 : f32 to vector<1x128xf32>
    %46 = arith.mulf %44, %45 : vector<1x128xf32>
    %47 = arith.mulf %41, %41 : vector<1x128xf32>
    %48 = arith.subf %46, %47 : vector<1x128xf32>
    %49 = vector.broadcast %41 : vector<1x128xf32> to vector<8x128xf32>
    %50 = arith.subf %37, %49 : vector<8x128xf32>
    %cst_26 = arith.constant 9.99999974E-6 : f32
    %51 = vector.broadcast %cst_26 : f32 to vector<1x128xf32>
    %52 = arith.addf %48, %51 : vector<1x128xf32>
    %53 = math.rsqrt %52 : vector<1x128xf32>
    %54 = vector.broadcast %53 : vector<1x128xf32> to vector<8x128xf32>
    %55 = arith.mulf %50, %54 : vector<8x128xf32>
    %56 = vector.extract_strided_slice %1 {offsets = [1, 0], sizes = [1, 128], strides = [1, 1]} : vector<4x128xf32> to vector<1x128xf32>
    %57 = vector.broadcast %56 : vector<1x128xf32> to vector<8x128xf32>
    %58 = arith.mulf %55, %57 : vector<8x128xf32>
    %59 = vector.extract_strided_slice %2 {offsets = [1, 0], sizes = [1, 128], strides = [1, 1]} : vector<4x128xf32> to vector<1x128xf32>
    %60 = vector.broadcast %59 : vector<1x128xf32> to vector<8x128xf32>
    %61 = arith.addf %58, %60 : vector<8x128xf32>
    %cst_27 = arith.constant 0.000000e+00 : f32
    %62 = vector.broadcast %cst_27 : f32 to vector<8x128xf32>
    %63 = arith.maximumf %61, %62 : vector<8x128xf32>
    %c0_28 = arith.constant 0 : index
    %c128_29 = arith.constant 128 : index
    %64 = vector.load %arg8[%c0_28, %c128_29] : memref<8x512xf32, #tpu.memory_space<vmem>>, vector<8x128xf32>
    tpu.vector_store %arg8[%c0_28, %c128_29], %63 {strides = array<i32>} : memref<8x512xf32, #tpu.memory_space<vmem>>, vector<8x128xf32>,
    %c0_30 = arith.constant 0 : index
    %c0_31 = arith.constant 0 : index
    %65 = vector.load %arg4[%c0_30, %c0_31] : memref<384x128xf32, #tpu.memory_space<vmem>>, vector<128x128xf32>
    %cst_32 = arith.constant dense<0.000000e+00> : vector<8x128xf32>
    %66 = tpu.matmul %0, %65, %cst_32 {dimension_numbers = #tpu.dot_dimension_numbers<[1], [0], [0], [1], [0, 0, 1, 1], [], []>} : vector<8x128xf32>, vector<128x128xf32>, vector<8x128xf32> -> vector<8x128xf32>
    %c0_33 = arith.constant 0 : index
    %c0_34 = arith.constant 0 : index
    %67 = vector.load %arg8[%c0_33, %c0_34] : memref<8x512xf32, #tpu.memory_space<vmem>>, vector<8x256xf32>
    %c128_35 = arith.constant 128 : index
    %c0_36 = arith.constant 0 : index
    %68 = vector.load %arg4[%c128_35, %c0_36] : memref<384x128xf32, #tpu.memory_space<vmem>>, vector<256x128xf32>
    %cst_37 = arith.constant dense<0.000000e+00> : vector<8x128xf32>
    %69 = tpu.matmul %67, %68, %cst_37 {dimension_numbers = #tpu.dot_dimension_numbers<[1], [0], [0], [1], [0, 0, 1, 1], [], []>} : vector<8x256xf32>, vector<256x128xf32>, vector<8x128xf32> -> vector<8x128xf32>
    %70 = arith.addf %66, %69 : vector<8x128xf32>
    %cst_38 = arith.constant dense<0.000000e+00> : vector<128xf32>
    %71 = vector.multi_reduction <add>, %70, %cst_38 [0] : vector<8x128xf32> to vector<128xf32>
    %72 = vector.shape_cast %71 : vector<128xf32> to vector<1x128xf32>
    %cst_39 = arith.constant 1.250000e-01 : f32
    %73 = vector.broadcast %cst_39 : f32 to vector<1x128xf32>
    %74 = arith.mulf %72, %73 : vector<1x128xf32>
    %75 = arith.mulf %70, %70 : vector<8x128xf32>
    %cst_40 = arith.constant dense<0.000000e+00> : vector<128xf32>
    %76 = vector.multi_reduction <add>, %75, %cst_40 [0] : vector<8x128xf32> to vector<128xf32>
    %77 = vector.shape_cast %76 : vector<128xf32> to vector<1x128xf32>
    %cst_41 = arith.constant 1.250000e-01 : f32
    %78 = vector.broadcast %cst_41 : f32 to vector<1x128xf32>
    %79 = arith.mulf %77, %78 : vector<1x128xf32>
    %80 = arith.mulf %74, %74 : vector<1x128xf32>
    %81 = arith.subf %79, %80 : vector<1x128xf32>
    %82 = vector.broadcast %74 : vector<1x128xf32> to vector<8x128xf32>
    %83 = arith.subf %70, %82 : vector<8x128xf32>
    %cst_42 = arith.constant 9.99999974E-6 : f32
    %84 = vector.broadcast %cst_42 : f32 to vector<1x128xf32>
    %85 = arith.addf %81, %84 : vector<1x128xf32>
    %86 = math.rsqrt %85 : vector<1x128xf32>
    %87 = vector.broadcast %86 : vector<1x128xf32> to vector<8x128xf32>
    %88 = arith.mulf %83, %87 : vector<8x128xf32>
    %89 = vector.extract_strided_slice %1 {offsets = [2, 0], sizes = [1, 128], strides = [1, 1]} : vector<4x128xf32> to vector<1x128xf32>
    %90 = vector.broadcast %89 : vector<1x128xf32> to vector<8x128xf32>
    %91 = arith.mulf %88, %90 : vector<8x128xf32>
    %92 = vector.extract_strided_slice %2 {offsets = [2, 0], sizes = [1, 128], strides = [1, 1]} : vector<4x128xf32> to vector<1x128xf32>
    %93 = vector.broadcast %92 : vector<1x128xf32> to vector<8x128xf32>
    %94 = arith.addf %91, %93 : vector<8x128xf32>
    %cst_43 = arith.constant 0.000000e+00 : f32
    %95 = vector.broadcast %cst_43 : f32 to vector<8x128xf32>
    %96 = arith.maximumf %94, %95 : vector<8x128xf32>
    %c0_44 = arith.constant 0 : index
    %c256 = arith.constant 256 : index
    %97 = vector.load %arg8[%c0_44, %c256] : memref<8x512xf32, #tpu.memory_space<vmem>>, vector<8x128xf32>
    tpu.vector_store %arg8[%c0_44, %c256], %96 {strides = array<i32>} : memref<8x512xf32, #tpu.memory_space<vmem>>, vector<8x128xf32>,
    %c0_45 = arith.constant 0 : index
    %c0_46 = arith.constant 0 : index
    %98 = vector.load %arg5[%c0_45, %c0_46] : memref<512x128xf32, #tpu.memory_space<vmem>>, vector<128x128xf32>
    %cst_47 = arith.constant dense<0.000000e+00> : vector<8x128xf32>
    %99 = tpu.matmul %0, %98, %cst_47 {dimension_numbers = #tpu.dot_dimension_numbers<[1], [0], [0], [1], [0, 0, 1, 1], [], []>} : vector<8x128xf32>, vector<128x128xf32>, vector<8x128xf32> -> vector<8x128xf32>
    %c0_48 = arith.constant 0 : index
    %c0_49 = arith.constant 0 : index
    %100 = vector.load %arg8[%c0_48, %c0_49] : memref<8x512xf32, #tpu.memory_space<vmem>>, vector<8x384xf32>
    %c128_50 = arith.constant 128 : index
    %c0_51 = arith.constant 0 : index
    %101 = vector.load %arg5[%c128_50, %c0_51] : memref<512x128xf32, #tpu.memory_space<vmem>>, vector<384x128xf32>
    %cst_52 = arith.constant dense<0.000000e+00> : vector<8x128xf32>
    %102 = tpu.matmul %100, %101, %cst_52 {dimension_numbers = #tpu.dot_dimension_numbers<[1], [0], [0], [1], [0, 0, 1, 1], [], []>} : vector<8x384xf32>, vector<384x128xf32>, vector<8x128xf32> -> vector<8x128xf32>
    %103 = arith.addf %99, %102 : vector<8x128xf32>
    %cst_53 = arith.constant dense<0.000000e+00> : vector<128xf32>
    %104 = vector.multi_reduction <add>, %103, %cst_53 [0] : vector<8x128xf32> to vector<128xf32>
    %105 = vector.shape_cast %104 : vector<128xf32> to vector<1x128xf32>
    %cst_54 = arith.constant 1.250000e-01 : f32
    %106 = vector.broadcast %cst_54 : f32 to vector<1x128xf32>
    %107 = arith.mulf %105, %106 : vector<1x128xf32>
    %108 = arith.mulf %103, %103 : vector<8x128xf32>
    %cst_55 = arith.constant dense<0.000000e+00> : vector<128xf32>
    %109 = vector.multi_reduction <add>, %108, %cst_55 [0] : vector<8x128xf32> to vector<128xf32>
    %110 = vector.shape_cast %109 : vector<128xf32> to vector<1x128xf32>
    %cst_56 = arith.constant 1.250000e-01 : f32
    %111 = vector.broadcast %cst_56 : f32 to vector<1x128xf32>
    %112 = arith.mulf %110, %111 : vector<1x128xf32>
    %113 = arith.mulf %107, %107 : vector<1x128xf32>
    %114 = arith.subf %112, %113 : vector<1x128xf32>
    %115 = vector.broadcast %107 : vector<1x128xf32> to vector<8x128xf32>
    %116 = arith.subf %103, %115 : vector<8x128xf32>
    %cst_57 = arith.constant 9.99999974E-6 : f32
    %117 = vector.broadcast %cst_57 : f32 to vector<1x128xf32>
    %118 = arith.addf %114, %117 : vector<1x128xf32>
    %119 = math.rsqrt %118 : vector<1x128xf32>
    %120 = vector.broadcast %119 : vector<1x128xf32> to vector<8x128xf32>
    %121 = arith.mulf %116, %120 : vector<8x128xf32>
    %122 = vector.extract_strided_slice %1 {offsets = [3, 0], sizes = [1, 128], strides = [1, 1]} : vector<4x128xf32> to vector<1x128xf32>
    %123 = vector.broadcast %122 : vector<1x128xf32> to vector<8x128xf32>
    %124 = arith.mulf %121, %123 : vector<8x128xf32>
    %125 = vector.extract_strided_slice %2 {offsets = [3, 0], sizes = [1, 128], strides = [1, 1]} : vector<4x128xf32> to vector<1x128xf32>
    %126 = vector.broadcast %125 : vector<1x128xf32> to vector<8x128xf32>
    %127 = arith.addf %124, %126 : vector<8x128xf32>
    %cst_58 = arith.constant 0.000000e+00 : f32
    %128 = vector.broadcast %cst_58 : f32 to vector<8x128xf32>
    %129 = arith.maximumf %127, %128 : vector<8x128xf32>
    %c0_59 = arith.constant 0 : index
    %c384 = arith.constant 384 : index
    %130 = vector.load %arg8[%c0_59, %c384] : memref<8x512xf32, #tpu.memory_space<vmem>>, vector<8x128xf32>
    tpu.vector_store %arg8[%c0_59, %c384], %129 {strides = array<i32>} : memref<8x512xf32, #tpu.memory_space<vmem>>, vector<8x128xf32>,
    return
  }
  func.func @transform_0(%arg0: i32) -> (i32, i32) {
    %c0_i32 = arith.constant 0 : i32
    %c0_i32_0 = arith.constant 0 : i32
    return %arg0, %c0_i32 : i32, i32
  }
  func.func @transform_1(%arg0: i32) -> (i32, i32) {
    %c0_i32 = arith.constant 0 : i32
    %c0_i32_0 = arith.constant 0 : i32
    %c0_i32_1 = arith.constant 0 : i32
    return %c0_i32, %c0_i32_0 : i32, i32
  }
  func.func @transform_2(%arg0: i32) -> (i32, i32) {
    %c0_i32 = arith.constant 0 : i32
    %c0_i32_0 = arith.constant 0 : i32
    %c0_i32_1 = arith.constant 0 : i32
    return %c0_i32, %c0_i32_0 : i32, i32
  }
  func.func @transform_3(%arg0: i32) -> (i32, i32) {
    %c0_i32 = arith.constant 0 : i32
    %c0_i32_0 = arith.constant 0 : i32
    %c0_i32_1 = arith.constant 0 : i32
    return %c0_i32, %c0_i32_0 : i32, i32
  }
  func.func @transform_4(%arg0: i32) -> (i32, i32) {
    %c0_i32 = arith.constant 0 : i32
    %c0_i32_0 = arith.constant 0 : i32
    %c0_i32_1 = arith.constant 0 : i32
    return %c0_i32, %c0_i32_0 : i32, i32
  }
  func.func @transform_5(%arg0: i32) -> (i32, i32) {
    %c0_i32 = arith.constant 0 : i32
    %c0_i32_0 = arith.constant 0 : i32
    %c0_i32_1 = arith.constant 0 : i32
    return %c0_i32, %c0_i32_0 : i32, i32
  }
  func.func @transform_6(%arg0: i32) -> (i32, i32) {
    %c0_i32 = arith.constant 0 : i32
    %c0_i32_0 = arith.constant 0 : i32
    %c0_i32_1 = arith.constant 0 : i32
    return %c0_i32, %c0_i32_0 : i32, i32
  }
  func.func @transform_7(%arg0: i32) -> (i32, i32) {
    %c0_i32 = arith.constant 0 : i32
    %c0_i32_0 = arith.constant 0 : i32
    return %arg0, %c0_i32 : i32, i32
  }
}

</mosaic_0001>

<llo_original>
// kernel: tpu_custom_call.1
$region0: #{tpu_custom_call.1}
  #allocation0 [shape = 'u32[]', space=smem, size = 0x4, offset = 0x4, fixed_abs, tag = 'smem constant byte address 0x4 - core index']
  #allocation1 [shape = 'u32[144,128]{1,0:T(1,128)}', space=vmem, size = 0x12000, scoped, tag = 'internal scratch']
  %s0 = inlined_call_operand.hbm [shape: f32[8,128], index: 0, kind: input, shape index: {}]
  %s1 = inlined_call_operand.hbm [shape: f32[128,128], index: 1, kind: input, shape index: {}]
  %s2 = inlined_call_operand.hbm [shape: f32[256,128], index: 2, kind: input, shape index: {}]
  %s3 = inlined_call_operand.hbm [shape: f32[384,128], index: 3, kind: input, shape index: {}]
  %s4 = inlined_call_operand.hbm [shape: f32[512,128], index: 4, kind: input, shape index: {}]
  %s5 = inlined_call_operand.vmem [shape: f32[4,128], index: 5, kind: input, shape index: {}]
  %s6 = inlined_call_operand.vmem [shape: f32[4,128], index: 6, kind: input, shape index: {}]
  %s7 = inlined_call_operand.hbm [shape: f32[8,512], index: 7, kind: output, shape index: {}]
  %s8 = sld [smem:[#allocation0]]
  $region58: #{tpu_custom_call.1} parent=0
    _
  %s10 = ssub.s32 1, %s8
  %s11 = scalar_select 0, %s10, %s8
  $region1: #{tpu_custom_call.1} parent=0
    #allocation2 [shape = 'u8[4096]{0}', space=vmem, size = 0x1000, scoped, tag = 'input window, operand 0, single buffered']
    #allocation3 [shape = 's32[1]{0}', space=sflag, size = 0x4, scoped, tag = 'scoped memory for tpu_custom_call.1']
    #allocation4 [shape = 's32[1]{0}', space=sflag, size = 0x4, scoped, tag = 'scoped memory for tpu_custom_call.1']
    #allocation5 [shape = 'u8[65536]{0}', space=vmem, size = 0x10000, scoped, tag = 'input window, operand 1, single buffered']
    #allocation6 [shape = 's32[1]{0}', space=sflag, size = 0x4, scoped, tag = 'scoped memory for tpu_custom_call.1']
    #allocation7 [shape = 'u8[131072]{0}', space=vmem, size = 0x20000, scoped, tag = 'input window, operand 2, single buffered']
    #allocation8 [shape = 'u8[196608]{0}', space=vmem, size = 0x30000, scoped, tag = 'input window, operand 3, single buffered']
    #allocation9 [shape = 's32[1]{0}', space=sflag, size = 0x4, scoped, tag = 'scoped memory for tpu_custom_call.1']
    #allocation10 [shape = 'u8[262144]{0}', space=vmem, size = 0x40000, scoped, tag = 'input window, operand 4, single buffered']
    #allocation11 [shape = 'u8[16384]{0}', space=vmem, size = 0x4000, scoped, tag = 'output window, operand 0, single buffered']
    %12 = vsyncpa [#allocation3], 0
    %13 = vsyncpa [#allocation6], 0
    %14 = vsyncpa [#allocation9], 0
    %15 = vsyncpa [#allocation4], 0
    // Predicated region
    $region2: #{tpu_custom_call.1} parent=1 // pred_check
      _
    $region3: #{tpu_custom_call.1} parent=1 // pred_check_branch
      %17 = sbr.rel (0) target = $region5
    $region4: #{tpu_custom_call.1} parent=1 // pred_region
      %s19 = ssub.s32 128, 128
      %20 = vsyncadd [#allocation3], %s19
      %s22 = sshll.u32 [#allocation2], 4
      %s23 = int_to_ptr.vmem [resolvable:$true] %s22
      %25 = dma.hbm_to_vmem [thread:$0]  %s0, 128, %s23, [#allocation3]
    $region5: #{tpu_custom_call.1} parent=1 // pred_fallthru
      _
    // Predicated region
    $region6: #{tpu_custom_call.1} parent=1 // pred_check
      _
    $region7: #{tpu_custom_call.1} parent=1 // pred_check_branch
      %27 = sbr.rel (0) target = $region9
    $region8: #{tpu_custom_call.1} parent=1 // pred_region
      %s29 = ssub.s32 2048, 2048
      %30 = vsyncadd [#allocation6], %s29
      %s31 = sshll.u32 [#allocation5], 4
      %s32 = int_to_ptr.vmem [resolvable:$true] %s31
      %37 = dma.hbm_to_vmem [thread:$0]  %s1, 2048, %s32, [#allocation6], 128, 128, 8
    $region9: #{tpu_custom_call.1} parent=1 // pred_fallthru
      _
    // Predicated region
    $region10: #{tpu_custom_call.1} parent=1 // pred_check
      _
    $region11: #{tpu_custom_call.1} parent=1 // pred_check_branch
      %39 = sbr.rel (0) target = $region13
    $region12: #{tpu_custom_call.1} parent=1 // pred_region
      %s41 = ssub.s32 4096, 4096
      %42 = vsyncadd [#allocation6], %s41
      %s43 = sshll.u32 [#allocation7], 4
      %s44 = int_to_ptr.vmem [resolvable:$true] %s43
      %49 = dma.hbm_to_vmem [thread:$0]  %s2, 4096, %s44, [#allocation6], 128, 128, 8
    $region13: #{tpu_custom_call.1} parent=1 // pred_fallthru
      _
    // Predicated region
    $region14: #{tpu_custom_call.1} parent=1 // pred_check
      _
    $region15: #{tpu_custom_call.1} parent=1 // pred_check_branch
      %51 = sbr.rel (0) target = $region17
    $region16: #{tpu_custom_call.1} parent=1 // pred_region
      %s53 = ssub.s32 6144, 6144
      %54 = vsyncadd [#allocation9], %s53
      %s55 = sshll.u32 [#allocation8], 4
      %s56 = int_to_ptr.vmem [resolvable:$true] %s55
      %61 = dma.hbm_to_vmem [thread:$0]  %s3, 6144, %s56, [#allocation9], 128, 128, 8
    $region17: #{tpu_custom_call.1} parent=1 // pred_fallthru
      _
    // Predicated region
    $region18: #{tpu_custom_call.1} parent=1 // pred_check
      _
    $region19: #{tpu_custom_call.1} parent=1 // pred_check_branch
      %63 = sbr.rel (0) target = $region21
    $region20: #{tpu_custom_call.1} parent=1 // pred_region
      %s65 = ssub.s32 8192, 8192
      %66 = vsyncadd [#allocation9], %s65
      %s67 = sshll.u32 [#allocation10], 4
      %s68 = int_to_ptr.vmem [resolvable:$true] %s67
      %73 = dma.hbm_to_vmem [thread:$0]  %s4, 8192, %s68, [#allocation9], 128, 128, 8
    $region21: #{tpu_custom_call.1} parent=1 // pred_fallthru
      _
    // Predicated region
    $region22: #{tpu_custom_call.1} parent=1 // pred_check
      _
    $region23: #{tpu_custom_call.1} parent=1 // pred_check_branch
      %75 = sbr.rel (0) target = $region25
    $region24: #{tpu_custom_call.1} parent=1 // pred_region
      _
    $region25: #{tpu_custom_call.1} parent=1 // pred_fallthru
      _
    // Predicated region
    $region26: #{tpu_custom_call.1} parent=1 // pred_check
      _
    $region27: #{tpu_custom_call.1} parent=1 // pred_check_branch
      %77 = sbr.rel (0) target = $region29
    $region28: #{tpu_custom_call.1} parent=1 // pred_region
      _
    $region29: #{tpu_custom_call.1} parent=1 // pred_fallthru
      _
    // Predicated region
    $region30: #{tpu_custom_call.1} parent=1 // pred_check
      _
    $region31: #{tpu_custom_call.1} parent=1 // pred_check_branch
      %79 = sbr.rel (0) target = $region33
    $region32: #{tpu_custom_call.1} parent=1 // pred_region
      %80 = dma.done [#allocation3], 128
    $region33: #{tpu_custom_call.1} parent=1 // pred_fallthru
      _
    // Predicated region
    $region34: #{tpu_custom_call.1} parent=1 // pred_check
      _
    $region35: #{tpu_custom_call.1} parent=1 // pred_check_branch
      %82 = sbr.rel (0) target = $region37
    $region36: #{tpu_custom_call.1} parent=1 // pred_region
      %83 = dma.done [#allocation6], 2048
    $region37: #{tpu_custom_call.1} parent=1 // pred_fallthru
      _
    // Predicated region
    $region38: #{tpu_custom_call.1} parent=1 // pred_check
      _
    $region39: #{tpu_custom_call.1} parent=1 // pred_check_branch
      %85 = sbr.rel (0) target = $region41
    $region40: #{tpu_custom_call.1} parent=1 // pred_region
      %86 = dma.done [#allocation6], 4096
    $region41: #{tpu_custom_call.1} parent=1 // pred_fallthru
      _
    // Predicated region
    $region42: #{tpu_custom_call.1} parent=1 // pred_check
      _
    $region43: #{tpu_custom_call.1} parent=1 // pred_check_branch
      %88 = sbr.rel (0) target = $region45
    $region44: #{tpu_custom_call.1} parent=1 // pred_region
      %89 = dma.done [#allocation9], 6144
    $region45: #{tpu_custom_call.1} parent=1 // pred_fallthru
      _
    // Predicated region
    $region46: #{tpu_custom_call.1} parent=1 // pred_check
      _
    $region47: #{tpu_custom_call.1} parent=1 // pred_check_branch
      %91 = sbr.rel (0) target = $region49
    $region48: #{tpu_custom_call.1} parent=1 // pred_region
      %92 = dma.done [#allocation9], 8192
    $region49: #{tpu_custom_call.1} parent=1 // pred_fallthru
      _
    %v93 = vld [vmem:[#allocation2] sm:$0xff]
    %v94 = vld [vmem:[%s5] sm:$0xf]
    %v95 = vld [vmem:[%s6] sm:$0xf]
    %v96 = vld [vmem:[#allocation5] sm:$0xff]
    %v97 = vld [vmem:[#allocation5 + $0x8] sm:$0xff]
    %v98 = vld [vmem:[#allocation5 + $0x10] sm:$0xff]
    %v99 = vld [vmem:[#allocation5 + $0x18] sm:$0xff]
    %v100 = vld [vmem:[#allocation5 + $0x20] sm:$0xff]
    %v101 = vld [vmem:[#allocation5 + $0x28] sm:$0xff]
    %v102 = vld [vmem:[#allocation5 + $0x30] sm:$0xff]
    %v103 = vld [vmem:[#allocation5 + $0x38] sm:$0xff]
    %v104 = vld [vmem:[#allocation5 + $0x40] sm:$0xff]
    %v105 = vld [vmem:[#allocation5 + $0x48] sm:$0xff]
    %v106 = vld [vmem:[#allocation5 + $0x50] sm:$0xff]
    %v107 = vld [vmem:[#allocation5 + $0x58] sm:$0xff]
    %v108 = vld [vmem:[#allocation5 + $0x60] sm:$0xff]
    %v109 = vld [vmem:[#allocation5 + $0x68] sm:$0xff]
    %v110 = vld [vmem:[#allocation5 + $0x70] sm:$0xff]
    %v111 = vld [vmem:[#allocation5 + $0x78] sm:$0xff]
    %112 = vmatprep.subr.mxu0 0.0
    %113 = vmatpush1.msra.mxu0 %v111
    %114 = vmatprep.subr.mxu0 0.0
    %115 = vmatpush1.msra.mxu0 %v110
    %116 = vmatprep.subr.mxu0 0.0
    %117 = vmatpush1.msra.mxu0 %v109
    %118 = vmatprep.subr.mxu0 0.0
    %119 = vmatpush1.msra.mxu0 %v108
    %120 = vmatprep.subr.mxu0 0.0
    %121 = vmatpush1.msra.mxu0 %v107
    %122 = vmatprep.subr.mxu0 0.0
    %123 = vmatpush1.msra.mxu0 %v106
    %124 = vmatprep.subr.mxu0 0.0
    %125 = vmatpush1.msra.mxu0 %v105
    %126 = vmatprep.subr.mxu0 0.0
    %127 = vmatpush1.msra.mxu0 %v104
    %128 = vmatprep.subr.mxu0 0.0
    %129 = vmatpush1.msra.mxu0 %v103
    %130 = vmatprep.subr.mxu0 0.0
    %131 = vmatpush1.msra.mxu0 %v102
    %132 = vmatprep.subr.mxu0 0.0
    %133 = vmatpush1.msra.mxu0 %v101
    %134 = vmatprep.subr.mxu0 0.0
    %135 = vmatpush1.msra.mxu0 %v100
    %136 = vmatprep.subr.mxu0 0.0
    %137 = vmatpush1.msra.mxu0 %v99
    %138 = vmatprep.subr.mxu0 0.0
    %139 = vmatpush1.msra.mxu0 %v98
    %140 = vmatprep.subr.mxu0 0.0
    %141 = vmatpush1.msra.mxu0 %v97
    %142 = vmatprep.subr.mxu0 0.0
    %143 = vmatpush1.msra.mxu0 %v96
    %144 = vmatprep.subr.mxu0 0.0
    %145 = vmatpush2.msra.mxu0 0.0
    %146 = vmatprep.subr.mxu0 0.0
    %147 = vmatpush2.msra.mxu0 0.0
    %148 = vmatprep.subr.mxu0 0.0
    %149 = vmatpush2.msra.mxu0 0.0
    %150 = vmatprep.subr.mxu0 0.0
    %151 = vmatpush2.msra.mxu0 0.0
    %152 = vmatprep.subr.mxu0 0.0
    %153 = vmatpush2.msra.mxu0 0.0
    %154 = vmatprep.subr.mxu0 0.0
    %155 = vmatpush2.msra.mxu0 0.0
    %156 = vmatprep.subr.mxu0 0.0
    %157 = vmatpush2.msra.mxu0 0.0
    %158 = vmatprep.subr.mxu0 0.0
    %159 = vmatpush2.msra.mxu0 0.0
    %160 = vmatprep.subr.mxu0 0.0
    %161 = vmatpush2.msra.mxu0 0.0
    %162 = vmatprep.subr.mxu0 0.0
    %163 = vmatpush2.msra.mxu0 0.0
    %164 = vmatprep.subr.mxu0 0.0
    %165 = vmatpush2.msra.mxu0 0.0
    %166 = vmatprep.subr.mxu0 0.0
    %167 = vmatpush2.msra.mxu0 0.0
    %168 = vmatprep.subr.mxu0 0.0
    %169 = vmatpush2.msra.mxu0 0.0
    %170 = vmatprep.subr.mxu0 0.0
    %171 = vmatpush2.msra.mxu0 0.0
    %172 = vmatprep.subr.mxu0 0.0
    %173 = vmatpush2.msra.mxu0 0.0
    %174 = vmatprep.subr.mxu0 0.0
    %175 = vmatpush2.msra.mxu0 0.0
    %176 = vmatprep.mubr.f32.mxu0 0.0
    %177 = vmatmul.mubr.f32.gmra.mxu0 %v93
    %v178 = vpop.f32.mrf.mxu0
    %v179 = vadd.f32 0.0, %v178
    %v180 = vpop.f32.mrf.mxu0
    %181 = vdwg.mxu0
    %v182 = vrot.slane %v179, 4
    %v183 = vadd.f32 %v179, %v182
    %v184 = vrot.slane %v183, 2
    %v185 = vadd.f32 %v183, %v184
    %v186 = vrot.slane %v185, 1
    %v187 = vadd.f32 %v185, %v186
    %v188 = vmul.f32 %v187, 0.125
    %v189 = vmul.f32 %v179, %v179
    %v190 = vrot.slane %v189, 4
    %v191 = vadd.f32 %v189, %v190
    %v192 = vrot.slane %v191, 2
    %v193 = vadd.f32 %v191, %v192
    %v194 = vrot.slane %v193, 1
    %v195 = vadd.f32 %v193, %v194
    %v196 = vmul.f32 %v195, 0.125
    %v197 = vmul.f32 %v188, %v188
    %v198 = vsub.f32 %v196, %v197
    %v199 = vsub.f32 %v179, %v188
    %v200 = vadd.f32 %v198, 1e-05
    %v201 = vrsqrt.pop %v200
    %v202 = vmul.f32 %v199, %v201
    %v203 = vlaneseq
    %v204 = vshrl.u32 %v203, 7
    %v205 = vsub.s32 0, %v204
    %v206 = vrot.slane %v94, %v205
    %v207 = vmul.f32 %v202, %v206
    %v208 = vlaneseq
    %v209 = vshrl.u32 %v208, 7
    %v210 = vsub.s32 0, %v209
    %v211 = vrot.slane %v95, %v210
    %v212 = vadd.f32 %v207, %v211
    %v213 = vmax.f32 %v212, 0.0
    %214 = vst [vmem:[#allocation11] sm:$0xff] %v213
    %v215 = vld [vmem:[#allocation7] sm:$0xff]
    %v216 = vld [vmem:[#allocation7 + $0x8] sm:$0xff]
    %v217 = vld [vmem:[#allocation7 + $0x10] sm:$0xff]
    %v218 = vld [vmem:[#allocation7 + $0x18] sm:$0xff]
    %v219 = vld [vmem:[#allocation7 + $0x20] sm:$0xff]
    %v220 = vld [vmem:[#allocation7 + $0x28] sm:$0xff]
    %v221 = vld [vmem:[#allocation7 + $0x30] sm:$0xff]
    %v222 = vld [vmem:[#allocation7 + $0x38] sm:$0xff]
    %v223 = vld [vmem:[#allocation7 + $0x40] sm:$0xff]
    %v224 = vld [vmem:[#allocation7 + $0x48] sm:$0xff]
    %v225 = vld [vmem:[#allocation7 + $0x50] sm:$0xff]
    %v226 = vld [vmem:[#allocation7 + $0x58] sm:$0xff]
    %v227 = vld [vmem:[#allocation7 + $0x60] sm:$0xff]
    %v228 = vld [vmem:[#allocation7 + $0x68] sm:$0xff]
    %v229 = vld [vmem:[#allocation7 + $0x70] sm:$0xff]
    %v230 = vld [vmem:[#allocation7 + $0x78] sm:$0xff]
    %v231 = vld [vmem:[#allocation11] sm:$0xff]
    %v232 = vld [vmem:[#allocation7 + $0x80] sm:$0xff]
    %v233 = vld [vmem:[#allocation7 + $0x88] sm:$0xff]
    %v234 = vld [vmem:[#allocation7 + $0x90] sm:$0xff]
    %v235 = vld [vmem:[#allocation7 + $0x98] sm:$0xff]
    %v236 = vld [vmem:[#allocation7 + $0xa0] sm:$0xff]
    %v237 = vld [vmem:[#allocation7 + $0xa8] sm:$0xff]
    %v238 = vld [vmem:[#allocation7 + $0xb0] sm:$0xff]
    %v239 = vld [vmem:[#allocation7 + $0xb8] sm:$0xff]
    %v240 = vld [vmem:[#allocation7 + $0xc0] sm:$0xff]
    %v241 = vld [vmem:[#allocation7 + $0xc8] sm:$0xff]
    %v242 = vld [vmem:[#allocation7 + $0xd0] sm:$0xff]
    %v243 = vld [vmem:[#allocation7 + $0xd8] sm:$0xff]
    %v244 = vld [vmem:[#allocation7 + $0xe0] sm:$0xff]
    %v245 = vld [vmem:[#allocation7 + $0xe8] sm:$0xff]
    %v246 = vld [vmem:[#allocation7 + $0xf0] sm:$0xff]
    %v247 = vld [vmem:[#allocation7 + $0xf8] sm:$0xff]
    %248 = vmatprep.subr.mxu0 0.0
    %249 = vmatpush1.msra.mxu0 %v247
    %250 = vmatprep.subr.mxu0 0.0
    %251 = vmatpush1.msra.mxu0 %v246
    %252 = vmatprep.subr.mxu0 0.0
    %253 = vmatpush1.msra.mxu0 %v245
    %254 = vmatprep.subr.mxu0 0.0
    %255 = vmatpush1.msra.mxu0 %v244
    %256 = vmatprep.subr.mxu0 0.0
    %257 = vmatpush1.msra.mxu0 %v243
    %258 = vmatprep.subr.mxu0 0.0
    %259 = vmatpush1.msra.mxu0 %v242
    %260 = vmatprep.subr.mxu0 0.0
    %261 = vmatpush1.msra.mxu0 %v241
    %262 = vmatprep.subr.mxu0 0.0
    %263 = vmatpush1.msra.mxu0 %v240
    %264 = vmatprep.subr.mxu0 0.0
    %265 = vmatpush1.msra.mxu0 %v239
    %266 = vmatprep.subr.mxu0 0.0
    %267 = vmatpush1.msra.mxu0 %v238
    %268 = vmatprep.subr.mxu0 0.0
    %269 = vmatpush1.msra.mxu0 %v237
    %270 = vmatprep.subr.mxu0 0.0
    %271 = vmatpush1.msra.mxu0 %v236
    %272 = vmatprep.subr.mxu0 0.0
    %273 = vmatpush1.msra.mxu0 %v235
    %274 = vmatprep.subr.mxu0 0.0
    %275 = vmatpush1.msra.mxu0 %v234
    %276 = vmatprep.subr.mxu0 0.0
    %277 = vmatpush1.msra.mxu0 %v233
    %278 = vmatprep.subr.mxu0 0.0
    %279 = vmatpush1.msra.mxu0 %v232
    %280 = vmatprep.subr.mxu0 0.0
    %281 = vmatpush2.msra.mxu0 0.0
    %282 = vmatprep.subr.mxu0 0.0
    %283 = vmatpush2.msra.mxu0 0.0
    %284 = vmatprep.subr.mxu0 0.0
    %285 = vmatpush2.msra.mxu0 0.0
    %286 = vmatprep.subr.mxu0 0.0
    %287 = vmatpush2.msra.mxu0 0.0
    %288 = vmatprep.subr.mxu0 0.0
    %289 = vmatpush2.msra.mxu0 0.0
    %290 = vmatprep.subr.mxu0 0.0
    %291 = vmatpush2.msra.mxu0 0.0
    %292 = vmatprep.subr.mxu0 0.0
    %293 = vmatpush2.msra.mxu0 0.0
    %294 = vmatprep.subr.mxu0 0.0
    %295 = vmatpush2.msra.mxu0 0.0
    %296 = vmatprep.subr.mxu0 0.0
    %297 = vmatpush2.msra.mxu0 0.0
    %298 = vmatprep.subr.mxu0 0.0
    %299 = vmatpush2.msra.mxu0 0.0
    %300 = vmatprep.subr.mxu0 0.0
    %301 = vmatpush2.msra.mxu0 0.0
    %302 = vmatprep.subr.mxu0 0.0
    %303 = vmatpush2.msra.mxu0 0.0
    %304 = vmatprep.subr.mxu0 0.0
    %305 = vmatpush2.msra.mxu0 0.0
    %306 = vmatprep.subr.mxu0 0.0
    %307 = vmatpush2.msra.mxu0 0.0
    %308 = vmatprep.subr.mxu0 0.0
    %309 = vmatpush2.msra.mxu0 0.0
    %310 = vmatprep.subr.mxu0 0.0
    %311 = vmatpush2.msra.mxu0 0.0
    %312 = vmatprep.mubr.f32.mxu0 0.0
    %313 = vmatmul.mubr.f32.gmra.mxu0 %v231
    %v314 = vpop.f32.mrf.mxu0
    %v315 = vadd.f32 0.0, %v314
    %v316 = vpop.f32.mrf.mxu0
    %317 = vdwg.mxu0
    %318 = vmatprep.subr.mxu0 0.0
    %319 = vmatpush1.msra.mxu0 %v230
    %320 = vmatprep.subr.mxu0 0.0
    %321 = vmatpush1.msra.mxu0 %v229
    %322 = vmatprep.subr.mxu0 0.0
    %323 = vmatpush1.msra.mxu0 %v228
    %324 = vmatprep.subr.mxu0 0.0
    %325 = vmatpush1.msra.mxu0 %v227
    %326 = vmatprep.subr.mxu0 0.0
    %327 = vmatpush1.msra.mxu0 %v226
    %328 = vmatprep.subr.mxu0 0.0
    %329 = vmatpush1.msra.mxu0 %v225
    %330 = vmatprep.subr.mxu0 0.0
    %331 = vmatpush1.msra.mxu0 %v224
    %332 = vmatprep.subr.mxu0 0.0
    %333 = vmatpush1.msra.mxu0 %v223
    %334 = vmatprep.subr.mxu0 0.0
    %335 = vmatpush1.msra.mxu0 %v222
    %336 = vmatprep.subr.mxu0 0.0
    %337 = vmatpush1.msra.mxu0 %v221
    %338 = vmatprep.subr.mxu0 0.0
    %339 = vmatpush1.msra.mxu0 %v220
    %340 = vmatprep.subr.mxu0 0.0
    %341 = vmatpush1.msra.mxu0 %v219
    %342 = vmatprep.subr.mxu0 0.0
    %343 = vmatpush1.msra.mxu0 %v218
    %344 = vmatprep.subr.mxu0 0.0
    %345 = vmatpush1.msra.mxu0 %v217
    %346 = vmatprep.subr.mxu0 0.0
    %347 = vmatpush1.msra.mxu0 %v216
    %348 = vmatprep.subr.mxu0 0.0
    %349 = vmatpush1.msra.mxu0 %v215
    %350 = vmatprep.subr.mxu0 0.0
    %351 = vmatpush2.msra.mxu0 0.0
    %352 = vmatprep.subr.mxu0 0.0
    %353 = vmatpush2.msra.mxu0 0.0
    %354 = vmatprep.subr.mxu0 0.0
    %355 = vmatpush2.msra.mxu0 0.0
    %356 = vmatprep.subr.mxu0 0.0
    %357 = vmatpush2.msra.mxu0 0.0
    %358 = vmatprep.subr.mxu0 0.0
    %359 = vmatpush2.msra.mxu0 0.0
    %360 = vmatprep.subr.mxu0 0.0
    %361 = vmatpush2.msra.mxu0 0.0
    %362 = vmatprep.subr.mxu0 0.0
    %363 = vmatpush2.msra.mxu0 0.0
    %364 = vmatprep.subr.mxu0 0.0
    %365 = vmatpush2.msra.mxu0 0.0
    %366 = vmatprep.subr.mxu0 0.0
    %367 = vmatpush2.msra.mxu0 0.0
    %368 = vmatprep.subr.mxu0 0.0
    %369 = vmatpush2.msra.mxu0 0.0
    %370 = vmatprep.subr.mxu0 0.0
    %371 = vmatpush2.msra.mxu0 0.0
    %372 = vmatprep.subr.mxu0 0.0
    %373 = vmatpush2.msra.mxu0 0.0
    %374 = vmatprep.subr.mxu0 0.0
    %375 = vmatpush2.msra.mxu0 0.0
    %376 = vmatprep.subr.mxu0 0.0
    %377 = vmatpush2.msra.mxu0 0.0
    %378 = vmatprep.subr.mxu0 0.0
    %379 = vmatpush2.msra.mxu0 0.0
    %380 = vmatprep.subr.mxu0 0.0
    %381 = vmatpush2.msra.mxu0 0.0
    %382 = vmatprep.mubr.f32.mxu0 0.0
    %383 = vmatmul.mubr.f32.gmra.mxu0 %v93
    %v384 = vpop.f32.mrf.mxu0
    %v385 = vadd.f32 %v315, %v384
    %v386 = vpop.f32.mrf.mxu0
    %387 = vdwg.mxu0
    %v388 = vrot.slane %v385, 4
    %v389 = vadd.f32 %v385, %v388
    %v390 = vrot.slane %v389, 2
    %v391 = vadd.f32 %v389, %v390
    %v392 = vrot.slane %v391, 1
    %v393 = vadd.f32 %v391, %v392
    %v394 = vmul.f32 %v393, 0.125
    %v395 = vmul.f32 %v385, %v385
    %v396 = vrot.slane %v395, 4
    %v397 = vadd.f32 %v395, %v396
    %v398 = vrot.slane %v397, 2
    %v399 = vadd.f32 %v397, %v398
    %v400 = vrot.slane %v399, 1
    %v401 = vadd.f32 %v399, %v400
    %v402 = vmul.f32 %v401, 0.125
    %v403 = vmul.f32 %v394, %v394
    %v404 = vsub.f32 %v402, %v403
    %v405 = vsub.f32 %v385, %v394
    %v406 = vadd.f32 %v404, 1e-05
    %v407 = vrsqrt.pop %v406
    %v408 = vmul.f32 %v405, %v407
    %v409 = vlaneseq
    %v410 = vshrl.u32 %v409, 7
    %v411 = vsub.s32 1, %v410
    %v412 = vrot.slane %v94, %v411
    %v413 = vmul.f32 %v408, %v412
    %v414 = vlaneseq
    %v415 = vshrl.u32 %v414, 7
    %v416 = vsub.s32 1, %v415
    %v417 = vrot.slane %v95, %v416
    %v418 = vadd.f32 %v413, %v417
    %v419 = vmax.f32 %v418, 0.0
    %420 = vst [vmem:[#allocation11 + $0x8] sm:$0xff] %v419
    %v421 = vld [vmem:[#allocation8] sm:$0xff]
    %v422 = vld [vmem:[#allocation8 + $0x8] sm:$0xff]
    %v423 = vld [vmem:[#allocation8 + $0x10] sm:$0xff]
    %v424 = vld [vmem:[#allocation8 + $0x18] sm:$0xff]
    %v425 = vld [vmem:[#allocation8 + $0x20] sm:$0xff]
    %v426 = vld [vmem:[#allocation8 + $0x28] sm:$0xff]
    %v427 = vld [vmem:[#allocation8 + $0x30] sm:$0xff]
    %v428 = vld [vmem:[#allocation8 + $0x38] sm:$0xff]
    %v429 = vld [vmem:[#allocation8 + $0x40] sm:$0xff]
    %v430 = vld [vmem:[#allocation8 + $0x48] sm:$0xff]
    %v431 = vld [vmem:[#allocation8 + $0x50] sm:$0xff]
    %v432 = vld [vmem:[#allocation8 + $0x58] sm:$0xff]
    %v433 = vld [vmem:[#allocation8 + $0x60] sm:$0xff]
    %v434 = vld [vmem:[#allocation8 + $0x68] sm:$0xff]
    %v435 = vld [vmem:[#allocation8 + $0x70] sm:$0xff]
    %v436 = vld [vmem:[#allocation8 + $0x78] sm:$0xff]
    %v437 = vld [vmem:[#allocation11] sm:$0xff]
    %v438 = vld [vmem:[#allocation11 + $0x8] sm:$0xff]
    %v439 = vld [vmem:[#allocation8 + $0x80] sm:$0xff]
    %v440 = vld [vmem:[#allocation8 + $0x88] sm:$0xff]
    %v441 = vld [vmem:[#allocation8 + $0x90] sm:$0xff]
    %v442 = vld [vmem:[#allocation8 + $0x98] sm:$0xff]
    %v443 = vld [vmem:[#allocation8 + $0xa0] sm:$0xff]
    %v444 = vld [vmem:[#allocation8 + $0xa8] sm:$0xff]
    %v445 = vld [vmem:[#allocation8 + $0xb0] sm:$0xff]
    %v446 = vld [vmem:[#allocation8 + $0xb8] sm:$0xff]
    %v447 = vld [vmem:[#allocation8 + $0xc0] sm:$0xff]
    %v448 = vld [vmem:[#allocation8 + $0xc8] sm:$0xff]
    %v449 = vld [vmem:[#allocation8 + $0xd0] sm:$0xff]
    %v450 = vld [vmem:[#allocation8 + $0xd8] sm:$0xff]
    %v451 = vld [vmem:[#allocation8 + $0xe0] sm:$0xff]
    %v452 = vld [vmem:[#allocation8 + $0xe8] sm:$0xff]
    %v453 = vld [vmem:[#allocation8 + $0xf0] sm:$0xff]
    %v454 = vld [vmem:[#allocation8 + $0xf8] sm:$0xff]
    %v455 = vld [vmem:[#allocation8 + $0x100] sm:$0xff]
    %v456 = vld [vmem:[#allocation8 + $0x108] sm:$0xff]
    %v457 = vld [vmem:[#allocation8 + $0x110] sm:$0xff]
    %v458 = vld [vmem:[#allocation8 + $0x118] sm:$0xff]
    %v459 = vld [vmem:[#allocation8 + $0x120] sm:$0xff]
    %v460 = vld [vmem:[#allocation8 + $0x128] sm:$0xff]
    %v461 = vld [vmem:[#allocation8 + $0x130] sm:$0xff]
    %v462 = vld [vmem:[#allocation8 + $0x138] sm:$0xff]
    %v463 = vld [vmem:[#allocation8 + $0x140] sm:$0xff]
    %v464 = vld [vmem:[#allocation8 + $0x148] sm:$0xff]
    %v465 = vld [vmem:[#allocation8 + $0x150] sm:$0xff]
    %v466 = vld [vmem:[#allocation8 + $0x158] sm:$0xff]
    %v467 = vld [vmem:[#allocation8 + $0x160] sm:$0xff]
    %v468 = vld [vmem:[#allocation8 + $0x168] sm:$0xff]
    %v469 = vld [vmem:[#allocation8 + $0x170] sm:$0xff]
    %v470 = vld [vmem:[#allocation8 + $0x178] sm:$0xff]
    %471 = vmatprep.subr.mxu0 0.0
    %472 = vmatpush1.msra.mxu0 %v454
    %473 = vmatprep.subr.mxu0 0.0
    %474 = vmatpush1.msra.mxu0 %v453
    %475 = vmatprep.subr.mxu0 0.0
    %476 = vmatpush1.msra.mxu0 %v452
    %477 = vmatprep.subr.mxu0 0.0
    %478 = vmatpush1.msra.mxu0 %v451
    %479 = vmatprep.subr.mxu0 0.0
    %480 = vmatpush1.msra.mxu0 %v450
    %481 = vmatprep.subr.mxu0 0.0
    %482 = vmatpush1.msra.mxu0 %v449
    %483 = vmatprep.subr.mxu0 0.0
    %484 = vmatpush1.msra.mxu0 %v448
    %485 = vmatprep.subr.mxu0 0.0
    %486 = vmatpush1.msra.mxu0 %v447
    %487 = vmatprep.subr.mxu0 0.0
    %488 = vmatpush1.msra.mxu0 %v446
    %489 = vmatprep.subr.mxu0 0.0
    %490 = vmatpush1.msra.mxu0 %v445
    %491 = vmatprep.subr.mxu0 0.0
    %492 = vmatpush1.msra.mxu0 %v444
    %493 = vmatprep.subr.mxu0 0.0
    %494 = vmatpush1.msra.mxu0 %v443
    %495 = vmatprep.subr.mxu0 0.0
    %496 = vmatpush1.msra.mxu0 %v442
    %497 = vmatprep.subr.mxu0 0.0
    %498 = vmatpush1.msra.mxu0 %v441
    %499 = vmatprep.subr.mxu0 0.0
    %500 = vmatpush1.msra.mxu0 %v440
    %501 = vmatprep.subr.mxu0 0.0
    %502 = vmatpush1.msra.mxu0 %v439
    %503 = vmatprep.subr.mxu0 0.0
    %504 = vmatpush2.msra.mxu0 %v470
    %505 = vmatprep.subr.mxu0 0.0
    %506 = vmatpush2.msra.mxu0 %v469
    %507 = vmatprep.subr.mxu0 0.0
    %508 = vmatpush2.msra.mxu0 %v468
    %509 = vmatprep.subr.mxu0 0.0
    %510 = vmatpush2.msra.mxu0 %v467
    %511 = vmatprep.subr.mxu0 0.0
    %512 = vmatpush2.msra.mxu0 %v466
    %513 = vmatprep.subr.mxu0 0.0
    %514 = vmatpush2.msra.mxu0 %v465
    %515 = vmatprep.subr.mxu0 0.0
    %516 = vmatpush2.msra.mxu0 %v464
    %517 = vmatprep.subr.mxu0 0.0
    %518 = vmatpush2.msra.mxu0 %v463
    %519 = vmatprep.subr.mxu0 0.0
    %520 = vmatpush2.msra.mxu0 %v462
    %521 = vmatprep.subr.mxu0 0.0
    %522 = vmatpush2.msra.mxu0 %v461
    %523 = vmatprep.subr.mxu0 0.0
    %524 = vmatpush2.msra.mxu0 %v460
    %525 = vmatprep.subr.mxu0 0.0
    %526 = vmatpush2.msra.mxu0 %v459
    %527 = vmatprep.subr.mxu0 0.0
    %528 = vmatpush2.msra.mxu0 %v458
    %529 = vmatprep.subr.mxu0 0.0
    %530 = vmatpush2.msra.mxu0 %v457
    %531 = vmatprep.subr.mxu0 0.0
    %532 = vmatpush2.msra.mxu0 %v456
    %533 = vmatprep.subr.mxu0 0.0
    %534 = vmatpush2.msra.mxu0 %v455
    %535 = vmatprep.mubr.f32.mxu0 %v438
    %536 = vmatmul.mubr.f32.gmra.mxu0 %v437
    %v537 = vpop.f32.mrf.mxu0
    %v538 = vadd.f32 0.0, %v537
    %v539 = vpop.f32.mrf.mxu0
    %540 = vdwg.mxu0
    %541 = vmatprep.subr.mxu0 0.0
    %542 = vmatpush1.msra.mxu0 %v436
    %543 = vmatprep.subr.mxu0 0.0
    %544 = vmatpush1.msra.mxu0 %v435
    %545 = vmatprep.subr.mxu0 0.0
    %546 = vmatpush1.msra.mxu0 %v434
    %547 = vmatprep.subr.mxu0 0.0
    %548 = vmatpush1.msra.mxu0 %v433
    %549 = vmatprep.subr.mxu0 0.0
    %550 = vmatpush1.msra.mxu0 %v432
    %551 = vmatprep.subr.mxu0 0.0
    %552 = vmatpush1.msra.mxu0 %v431
    %553 = vmatprep.subr.mxu0 0.0
    %554 = vmatpush1.msra.mxu0 %v430
    %555 = vmatprep.subr.mxu0 0.0
    %556 = vmatpush1.msra.mxu0 %v429
    %557 = vmatprep.subr.mxu0 0.0
    %558 = vmatpush1.msra.mxu0 %v428
    %559 = vmatprep.subr.mxu0 0.0
    %560 = vmatpush1.msra.mxu0 %v427
    %561 = vmatprep.subr.mxu0 0.0
    %562 = vmatpush1.msra.mxu0 %v426
    %563 = vmatprep.subr.mxu0 0.0
    %564 = vmatpush1.msra.mxu0 %v425
    %565 = vmatprep.subr.mxu0 0.0
    %566 = vmatpush1.msra.mxu0 %v424
    %567 = vmatprep.subr.mxu0 0.0
    %568 = vmatpush1.msra.mxu0 %v423
    %569 = vmatprep.subr.mxu0 0.0
    %570 = vmatpush1.msra.mxu0 %v422
    %571 = vmatprep.subr.mxu0 0.0
    %572 = vmatpush1.msra.mxu0 %v421
    %573 = vmatprep.subr.mxu0 0.0
    %574 = vmatpush2.msra.mxu0 0.0
    %575 = vmatprep.subr.mxu0 0.0
    %576 = vmatpush2.msra.mxu0 0.0
    %577 = vmatprep.subr.mxu0 0.0
    %578 = vmatpush2.msra.mxu0 0.0
    %579 = vmatprep.subr.mxu0 0.0
    %580 = vmatpush2.msra.mxu0 0.0
    %581 = vmatprep.subr.mxu0 0.0
    %582 = vmatpush2.msra.mxu0 0.0
    %583 = vmatprep.subr.mxu0 0.0
    %584 = vmatpush2.msra.mxu0 0.0
    %585 = vmatprep.subr.mxu0 0.0
    %586 = vmatpush2.msra.mxu0 0.0
    %587 = vmatprep.subr.mxu0 0.0
    %588 = vmatpush2.msra.mxu0 0.0
    %589 = vmatprep.subr.mxu0 0.0
    %590 = vmatpush2.msra.mxu0 0.0
    %591 = vmatprep.subr.mxu0 0.0
    %592 = vmatpush2.msra.mxu0 0.0
    %593 = vmatprep.subr.mxu0 0.0
    %594 = vmatpush2.msra.mxu0 0.0
    %595 = vmatprep.subr.mxu0 0.0
    %596 = vmatpush2.msra.mxu0 0.0
    %597 = vmatprep.subr.mxu0 0.0
    %598 = vmatpush2.msra.mxu0 0.0
    %599 = vmatprep.subr.mxu0 0.0
    %600 = vmatpush2.msra.mxu0 0.0
    %601 = vmatprep.subr.mxu0 0.0
    %602 = vmatpush2.msra.mxu0 0.0
    %603 = vmatprep.subr.mxu0 0.0
    %604 = vmatpush2.msra.mxu0 0.0
    %605 = vmatprep.mubr.f32.mxu0 0.0
    %606 = vmatmul.mubr.f32.gmra.mxu0 %v93
    %v607 = vpop.f32.mrf.mxu0
    %v608 = vadd.f32 %v538, %v607
    %v609 = vpop.f32.mrf.mxu0
    %610 = vdwg.mxu0
    %v611 = vrot.slane %v608, 4
    %v612 = vadd.f32 %v608, %v611
    %v613 = vrot.slane %v612, 2
    %v614 = vadd.f32 %v612, %v613
    %v615 = vrot.slane %v614, 1
    %v616 = vadd.f32 %v614, %v615
    %v617 = vmul.f32 %v616, 0.125
    %v618 = vmul.f32 %v608, %v608
    %v619 = vrot.slane %v618, 4
    %v620 = vadd.f32 %v618, %v619
    %v621 = vrot.slane %v620, 2
    %v622 = vadd.f32 %v620, %v621
    %v623 = vrot.slane %v622, 1
    %v624 = vadd.f32 %v622, %v623
    %v625 = vmul.f32 %v624, 0.125
    %v626 = vmul.f32 %v617, %v617
    %v627 = vsub.f32 %v625, %v626
    %v628 = vsub.f32 %v608, %v617
    %v629 = vadd.f32 %v627, 1e-05
    %v630 = vrsqrt.pop %v629
    %v631 = vmul.f32 %v628, %v630
    %v632 = vlaneseq
    %v633 = vshrl.u32 %v632, 7
    %v634 = vsub.s32 2, %v633
    %v635 = vrot.slane %v94, %v634
    %v636 = vmul.f32 %v631, %v635
    %v637 = vlaneseq
    %v638 = vshrl.u32 %v637, 7
    %v639 = vsub.s32 2, %v638
    %v640 = vrot.slane %v95, %v639
    %v641 = vadd.f32 %v636, %v640
    %v642 = vmax.f32 %v641, 0.0
    %643 = vst [vmem:[#allocation11 + $0x10] sm:$0xff] %v642
    %v644 = vld [vmem:[#allocation10] sm:$0xff]
    %v645 = vld [vmem:[#allocation10 + $0x8] sm:$0xff]
    %v646 = vld [vmem:[#allocation10 + $0x10] sm:$0xff]
    %v647 = vld [vmem:[#allocation10 + $0x18] sm:$0xff]
    %v648 = vld [vmem:[#allocation10 + $0x20] sm:$0xff]
    %v649 = vld [vmem:[#allocation10 + $0x28] sm:$0xff]
    %v650 = vld [vmem:[#allocation10 + $0x30] sm:$0xff]
    %v651 = vld [vmem:[#allocation10 + $0x38] sm:$0xff]
    %v652 = vld [vmem:[#allocation10 + $0x40] sm:$0xff]
    %v653 = vld [vmem:[#allocation10 + $0x48] sm:$0xff]
    %v654 = vld [vmem:[#allocation10 + $0x50] sm:$0xff]
    %v655 = vld [vmem:[#allocation10 + $0x58] sm:$0xff]
    %v656 = vld [vmem:[#allocation10 + $0x60] sm:$0xff]
    %v657 = vld [vmem:[#allocation10 + $0x68] sm:$0xff]
    %v658 = vld [vmem:[#allocation10 + $0x70] sm:$0xff]
    %v659 = vld [vmem:[#allocation10 + $0x78] sm:$0xff]
    %v660 = vld [vmem:[#allocation11] sm:$0xff]
    %v661 = vld [vmem:[#allocation11 + $0x8] sm:$0xff]
    %v662 = vld [vmem:[#allocation11 + $0x10] sm:$0xff]
    %v663 = vld [vmem:[#allocation10 + $0x80] sm:$0xff]
    %v664 = vld [vmem:[#allocation10 + $0x88] sm:$0xff]
    %v665 = vld [vmem:[#allocation10 + $0x90] sm:$0xff]
    %v666 = vld [vmem:[#allocation10 + $0x98] sm:$0xff]
    %v667 = vld [vmem:[#allocation10 + $0xa0] sm:$0xff]
    %v668 = vld [vmem:[#allocation10 + $0xa8] sm:$0xff]
    %v669 = vld [vmem:[#allocation10 + $0xb0] sm:$0xff]
    %v670 = vld [vmem:[#allocation10 + $0xb8] sm:$0xff]
    %v671 = vld [vmem:[#allocation10 + $0xc0] sm:$0xff]
    %v672 = vld [vmem:[#allocation10 + $0xc8] sm:$0xff]
    %v673 = vld [vmem:[#allocation10 + $0xd0] sm:$0xff]
    %v674 = vld [vmem:[#allocation10 + $0xd8] sm:$0xff]
    %v675 = vld [vmem:[#allocation10 + $0xe0] sm:$0xff]
    %v676 = vld [vmem:[#allocation10 + $0xe8] sm:$0xff]
    %v677 = vld [vmem:[#allocation10 + $0xf0] sm:$0xff]
    %v678 = vld [vmem:[#allocation10 + $0xf8] sm:$0xff]
    %v679 = vld [vmem:[#allocation10 + $0x100] sm:$0xff]
    %v680 = vld [vmem:[#allocation10 + $0x108] sm:$0xff]
    %v681 = vld [vmem:[#allocation10 + $0x110] sm:$0xff]
    %v682 = vld [vmem:[#allocation10 + $0x118] sm:$0xff]
    %v683 = vld [vmem:[#allocation10 + $0x120] sm:$0xff]
    %v684 = vld [vmem:[#allocation10 + $0x128] sm:$0xff]
    %v685 = vld [vmem:[#allocation10 + $0x130] sm:$0xff]
    %v686 = vld [vmem:[#allocation10 + $0x138] sm:$0xff]
    %v687 = vld [vmem:[#allocation10 + $0x140] sm:$0xff]
    %v688 = vld [vmem:[#allocation10 + $0x148] sm:$0xff]
    %v689 = vld [vmem:[#allocation10 + $0x150] sm:$0xff]
    %v690 = vld [vmem:[#allocation10 + $0x158] sm:$0xff]
    %v691 = vld [vmem:[#allocation10 + $0x160] sm:$0xff]
    %v692 = vld [vmem:[#allocation10 + $0x168] sm:$0xff]
    %v693 = vld [vmem:[#allocation10 + $0x170] sm:$0xff]
    %v694 = vld [vmem:[#allocation10 + $0x178] sm:$0xff]
    %v695 = vld [vmem:[#allocation10 + $0x180] sm:$0xff]
    %v696 = vld [vmem:[#allocation10 + $0x188] sm:$0xff]
    %v697 = vld [vmem:[#allocation10 + $0x190] sm:$0xff]
    %v698 = vld [vmem:[#allocation10 + $0x198] sm:$0xff]
    %v699 = vld [vmem:[#allocation10 + $0x1a0] sm:$0xff]
    %v700 = vld [vmem:[#allocation10 + $0x1a8] sm:$0xff]
    %v701 = vld [vmem:[#allocation10 + $0x1b0] sm:$0xff]
    %v702 = vld [vmem:[#allocation10 + $0x1b8] sm:$0xff]
    %v703 = vld [vmem:[#allocation10 + $0x1c0] sm:$0xff]
    %v704 = vld [vmem:[#allocation10 + $0x1c8] sm:$0xff]
    %v705 = vld [vmem:[#allocation10 + $0x1d0] sm:$0xff]
    %v706 = vld [vmem:[#allocation10 + $0x1d8] sm:$0xff]
    %v707 = vld [vmem:[#allocation10 + $0x1e0] sm:$0xff]
    %v708 = vld [vmem:[#allocation10 + $0x1e8] sm:$0xff]
    %v709 = vld [vmem:[#allocation10 + $0x1f0] sm:$0xff]
    %v710 = vld [vmem:[#allocation10 + $0x1f8] sm:$0xff]
    %711 = vmatprep.subr.mxu0 0.0
    %712 = vmatpush1.msra.mxu0 %v678
    %713 = vmatprep.subr.mxu0 0.0
    %714 = vmatpush1.msra.mxu0 %v677
    %715 = vmatprep.subr.mxu0 0.0
    %716 = vmatpush1.msra.mxu0 %v676
    %717 = vmatprep.subr.mxu0 0.0
    %718 = vmatpush1.msra.mxu0 %v675
    %719 = vmatprep.subr.mxu0 0.0
    %720 = vmatpush1.msra.mxu0 %v674
    %721 = vmatprep.subr.mxu0 0.0
    %722 = vmatpush1.msra.mxu0 %v673
    %723 = vmatprep.subr.mxu0 0.0
    %724 = vmatpush1.msra.mxu0 %v672
    %725 = vmatprep.subr.mxu0 0.0
    %726 = vmatpush1.msra.mxu0 %v671
    %727 = vmatprep.subr.mxu0 0.0
    %728 = vmatpush1.msra.mxu0 %v670
    %729 = vmatprep.subr.mxu0 0.0
    %730 = vmatpush1.msra.mxu0 %v669
    %731 = vmatprep.subr.mxu0 0.0
    %732 = vmatpush1.msra.mxu0 %v668
    %733 = vmatprep.subr.mxu0 0.0
    %734 = vmatpush1.msra.mxu0 %v667
    %735 = vmatprep.subr.mxu0 0.0
    %736 = vmatpush1.msra.mxu0 %v666
    %737 = vmatprep.subr.mxu0 0.0
    %738 = vmatpush1.msra.mxu0 %v665
    %739 = vmatprep.subr.mxu0 0.0
    %740 = vmatpush1.msra.mxu0 %v664
    %741 = vmatprep.subr.mxu0 0.0
    %742 = vmatpush1.msra.mxu0 %v663
    %743 = vmatprep.subr.mxu0 0.0
    %744 = vmatpush2.msra.mxu0 %v694
    %745 = vmatprep.subr.mxu0 0.0
    %746 = vmatpush2.msra.mxu0 %v693
    %747 = vmatprep.subr.mxu0 0.0
    %748 = vmatpush2.msra.mxu0 %v692
    %749 = vmatprep.subr.mxu0 0.0
    %750 = vmatpush2.msra.mxu0 %v691
    %751 = vmatprep.subr.mxu0 0.0
    %752 = vmatpush2.msra.mxu0 %v690
    %753 = vmatprep.subr.mxu0 0.0
    %754 = vmatpush2.msra.mxu0 %v689
    %755 = vmatprep.subr.mxu0 0.0
    %756 = vmatpush2.msra.mxu0 %v688
    %757 = vmatprep.subr.mxu0 0.0
    %758 = vmatpush2.msra.mxu0 %v687
    %759 = vmatprep.subr.mxu0 0.0
    %760 = vmatpush2.msra.mxu0 %v686
    %761 = vmatprep.subr.mxu0 0.0
    %762 = vmatpush2.msra.mxu0 %v685
    %763 = vmatprep.subr.mxu0 0.0
    %764 = vmatpush2.msra.mxu0 %v684
    %765 = vmatprep.subr.mxu0 0.0
    %766 = vmatpush2.msra.mxu0 %v683
    %767 = vmatprep.subr.mxu0 0.0
    %768 = vmatpush2.msra.mxu0 %v682
    %769 = vmatprep.subr.mxu0 0.0
    %770 = vmatpush2.msra.mxu0 %v681
    %771 = vmatprep.subr.mxu0 0.0
    %772 = vmatpush2.msra.mxu0 %v680
    %773 = vmatprep.subr.mxu0 0.0
    %774 = vmatpush2.msra.mxu0 %v679
    %775 = vmatprep.mubr.f32.mxu0 %v661
    %776 = vmatmul.mubr.f32.gmra.mxu0 %v660
    %v777 = vpop.f32.mrf.mxu0
    %v778 = vadd.f32 0.0, %v777
    %v779 = vpop.f32.mrf.mxu0
    %780 = vdwg.mxu0
    %781 = vmatprep.subr.mxu0 0.0
    %782 = vmatpush1.msra.mxu0 %v710
    %783 = vmatprep.subr.mxu0 0.0
    %784 = vmatpush1.msra.mxu0 %v709
    %785 = vmatprep.subr.mxu0 0.0
    %786 = vmatpush1.msra.mxu0 %v708
    %787 = vmatprep.subr.mxu0 0.0
    %788 = vmatpush1.msra.mxu0 %v707
    %789 = vmatprep.subr.mxu0 0.0
    %790 = vmatpush1.msra.mxu0 %v706
    %791 = vmatprep.subr.mxu0 0.0
    %792 = vmatpush1.msra.mxu0 %v705
    %793 = vmatprep.subr.mxu0 0.0
    %794 = vmatpush1.msra.mxu0 %v704
    %795 = vmatprep.subr.mxu0 0.0
    %796 = vmatpush1.msra.mxu0 %v703
    %797 = vmatprep.subr.mxu0 0.0
    %798 = vmatpush1.msra.mxu0 %v702
    %799 = vmatprep.subr.mxu0 0.0
    %800 = vmatpush1.msra.mxu0 %v701
    %801 = vmatprep.subr.mxu0 0.0
    %802 = vmatpush1.msra.mxu0 %v700
    %803 = vmatprep.subr.mxu0 0.0
    %804 = vmatpush1.msra.mxu0 %v699
    %805 = vmatprep.subr.mxu0 0.0
    %806 = vmatpush1.msra.mxu0 %v698
    %807 = vmatprep.subr.mxu0 0.0
    %808 = vmatpush1.msra.mxu0 %v697
    %809 = vmatprep.subr.mxu0 0.0
    %810 = vmatpush1.msra.mxu0 %v696
    %811 = vmatprep.subr.mxu0 0.0
    %812 = vmatpush1.msra.mxu0 %v695
    %813 = vmatprep.subr.mxu0 0.0
    %814 = vmatpush2.msra.mxu0 0.0
    %815 = vmatprep.subr.mxu0 0.0
    %816 = vmatpush2.msra.mxu0 0.0
    %817 = vmatprep.subr.mxu0 0.0
    %818 = vmatpush2.msra.mxu0 0.0
    %819 = vmatprep.subr.mxu0 0.0
    %820 = vmatpush2.msra.mxu0 0.0
    %821 = vmatprep.subr.mxu0 0.0
    %822 = vmatpush2.msra.mxu0 0.0
    %823 = vmatprep.subr.mxu0 0.0
    %824 = vmatpush2.msra.mxu0 0.0
    %825 = vmatprep.subr.mxu0 0.0
    %826 = vmatpush2.msra.mxu0 0.0
    %827 = vmatprep.subr.mxu0 0.0
    %828 = vmatpush2.msra.mxu0 0.0
    %829 = vmatprep.subr.mxu0 0.0
    %830 = vmatpush2.msra.mxu0 0.0
    %831 = vmatprep.subr.mxu0 0.0
    %832 = vmatpush2.msra.mxu0 0.0
    %833 = vmatprep.subr.mxu0 0.0
    %834 = vmatpush2.msra.mxu0 0.0
    %835 = vmatprep.subr.mxu0 0.0
    %836 = vmatpush2.msra.mxu0 0.0
    %837 = vmatprep.subr.mxu0 0.0
    %838 = vmatpush2.msra.mxu0 0.0
    %839 = vmatprep.subr.mxu0 0.0
    %840 = vmatpush2.msra.mxu0 0.0
    %841 = vmatprep.subr.mxu0 0.0
    %842 = vmatpush2.msra.mxu0 0.0
    %843 = vmatprep.subr.mxu0 0.0
    %844 = vmatpush2.msra.mxu0 0.0
    %845 = vmatprep.mubr.f32.mxu0 0.0
    %846 = vmatmul.mubr.f32.gmra.mxu0 %v662
    %v847 = vpop.f32.mrf.mxu0
    %v848 = vadd.f32 %v778, %v847
    %v849 = vpop.f32.mrf.mxu0
    %850 = vdwg.mxu0
    %851 = vmatprep.subr.mxu0 0.0
    %852 = vmatpush1.msra.mxu0 %v659
    %853 = vmatprep.subr.mxu0 0.0
    %854 = vmatpush1.msra.mxu0 %v658
    %855 = vmatprep.subr.mxu0 0.0
    %856 = vmatpush1.msra.mxu0 %v657
    %857 = vmatprep.subr.mxu0 0.0
    %858 = vmatpush1.msra.mxu0 %v656
    %859 = vmatprep.subr.mxu0 0.0
    %860 = vmatpush1.msra.mxu0 %v655
    %861 = vmatprep.subr.mxu0 0.0
    %862 = vmatpush1.msra.mxu0 %v654
    %863 = vmatprep.subr.mxu0 0.0
    %864 = vmatpush1.msra.mxu0 %v653
    %865 = vmatprep.subr.mxu0 0.0
    %866 = vmatpush1.msra.mxu0 %v652
    %867 = vmatprep.subr.mxu0 0.0
    %868 = vmatpush1.msra.mxu0 %v651
    %869 = vmatprep.subr.mxu0 0.0
    %870 = vmatpush1.msra.mxu0 %v650
    %871 = vmatprep.subr.mxu0 0.0
    %872 = vmatpush1.msra.mxu0 %v649
    %873 = vmatprep.subr.mxu0 0.0
    %874 = vmatpush1.msra.mxu0 %v648
    %875 = vmatprep.subr.mxu0 0.0
    %876 = vmatpush1.msra.mxu0 %v647
    %877 = vmatprep.subr.mxu0 0.0
    %878 = vmatpush1.msra.mxu0 %v646
    %879 = vmatprep.subr.mxu0 0.0
    %880 = vmatpush1.msra.mxu0 %v645
    %881 = vmatprep.subr.mxu0 0.0
    %882 = vmatpush1.msra.mxu0 %v644
    %883 = vmatprep.subr.mxu0 0.0
    %884 = vmatpush2.msra.mxu0 0.0
    %885 = vmatprep.subr.mxu0 0.0
    %886 = vmatpush2.msra.mxu0 0.0
    %887 = vmatprep.subr.mxu0 0.0
    %888 = vmatpush2.msra.mxu0 0.0
    %889 = vmatprep.subr.mxu0 0.0
    %890 = vmatpush2.msra.mxu0 0.0
    %891 = vmatprep.subr.mxu0 0.0
    %892 = vmatpush2.msra.mxu0 0.0
    %893 = vmatprep.subr.mxu0 0.0
    %894 = vmatpush2.msra.mxu0 0.0
    %895 = vmatprep.subr.mxu0 0.0
    %896 = vmatpush2.msra.mxu0 0.0
    %897 = vmatprep.subr.mxu0 0.0
    %898 = vmatpush2.msra.mxu0 0.0
    %899 = vmatprep.subr.mxu0 0.0
    %900 = vmatpush2.msra.mxu0 0.0
    %901 = vmatprep.subr.mxu0 0.0
    %902 = vmatpush2.msra.mxu0 0.0
    %903 = vmatprep.subr.mxu0 0.0
    %904 = vmatpush2.msra.mxu0 0.0
    %905 = vmatprep.subr.mxu0 0.0
    %906 = vmatpush2.msra.mxu0 0.0
    %907 = vmatprep.subr.mxu0 0.0
    %908 = vmatpush2.msra.mxu0 0.0
    %909 = vmatprep.subr.mxu0 0.0
    %910 = vmatpush2.msra.mxu0 0.0
    %911 = vmatprep.subr.mxu0 0.0
    %912 = vmatpush2.msra.mxu0 0.0
    %913 = vmatprep.subr.mxu0 0.0
    %914 = vmatpush2.msra.mxu0 0.0
    %915 = vmatprep.mubr.f32.mxu0 0.0
    %916 = vmatmul.mubr.f32.gmra.mxu0 %v93
    %v917 = vpop.f32.mrf.mxu0
    %v918 = vadd.f32 %v848, %v917
    %v919 = vpop.f32.mrf.mxu0
    %920 = vdwg.mxu0
    %v921 = vrot.slane %v918, 4
    %v922 = vadd.f32 %v918, %v921
    %v923 = vrot.slane %v922, 2
    %v924 = vadd.f32 %v922, %v923
    %v925 = vrot.slane %v924, 1
    %v926 = vadd.f32 %v924, %v925
    %v927 = vmul.f32 %v926, 0.125
    %v928 = vmul.f32 %v918, %v918
    %v929 = vrot.slane %v928, 4
    %v930 = vadd.f32 %v928, %v929
    %v931 = vrot.slane %v930, 2
    %v932 = vadd.f32 %v930, %v931
    %v933 = vrot.slane %v932, 1
    %v934 = vadd.f32 %v932, %v933
    %v935 = vmul.f32 %v934, 0.125
    %v936 = vmul.f32 %v927, %v927
    %v937 = vsub.f32 %v935, %v936
    %v938 = vsub.f32 %v918, %v927
    %v939 = vadd.f32 %v937, 1e-05
    %v940 = vrsqrt.pop %v939
    %v941 = vmul.f32 %v938, %v940
    %v942 = vlaneseq
    %v943 = vshrl.u32 %v942, 7
    %v944 = vsub.s32 3, %v943
    %v945 = vrot.slane %v94, %v944
    %v946 = vmul.f32 %v941, %v945
    %v947 = vlaneseq
    %v948 = vshrl.u32 %v947, 7
    %v949 = vsub.s32 3, %v948
    %v950 = vrot.slane %v95, %v949
    %v951 = vadd.f32 %v946, %v950
    %v952 = vmax.f32 %v951, 0.0
    %953 = vst [vmem:[#allocation11 + $0x18] sm:$0xff] %v952
    // Predicated region
    $region50: #{tpu_custom_call.1} parent=1 // pred_check
      _
    $region51: #{tpu_custom_call.1} parent=1 // pred_check_branch
      %955 = sbr.rel (0) target = $region53
    $region52: #{tpu_custom_call.1} parent=1 // pred_region
      %s957 = ssub.s32 512, 512
      %958 = vsyncadd [#allocation4], %s957
      %s960 = sshll.u32 [#allocation11], 4
      %s961 = int_to_ptr.vmem [resolvable:$true] %s960
      %963 = dma.vmem_to_hbm [thread:$0]  %s961, 512, %s7, [#allocation4]
    $region53: #{tpu_custom_call.1} parent=1 // pred_fallthru
      _
    // Predicated region
    $region54: #{tpu_custom_call.1} parent=1 // pred_check
      _
    $region55: #{tpu_custom_call.1} parent=1 // pred_check_branch
      %965 = sbr.rel (0) target = $region57
    $region56: #{tpu_custom_call.1} parent=1 // pred_region
      %966 = dma.done [#allocation4], 512
    $region57: #{tpu_custom_call.1} parent=1 // pred_fallthru
      _
    %967 = vsyncpa [#allocation3], 1
    %968 = vsyncpa [#allocation6], 1
    %969 = vsyncpa [#allocation9], 1
    %970 = vsyncpa [#allocation4], 1

</llo_original>
